<compile_context>
chip_gen: v6e
topology: v6e:2x2x1
jax: 0.10.0
libtpu: 0.0.40
codegen_flags: <defaults>
</compile_context>

<pallas_src>
import numpy as np
import jax
import jax.numpy as jnp
from jax.experimental import pallas as pl
from jax.experimental.pallas import tpu as pltpu

OUTPUT_SIZE = 1
EMB = 32
HID = 64
NLAYERS = 2
GP = 128          # padded gate / hidden width (one full vreg lane group per gate)


# --------------------------------------------------------------------------------------
# Kernel: whole decode (T steps) in one invocation, hidden state carried in vregs
# --------------------------------------------------------------------------------------
def decoder_kernel(xs_ref, h_init_ref,
                   we_ref, be_ref,
                   wrz0_ref, wihn0_ref, whhn0_ref, brz0_ref, bihn0_ref, bhhn0_ref,
                   wrz1_ref, wihn1_ref, whhn1_ref, brz1_ref, bihn1_ref, bhhn1_ref,
                   wfc_ref, bfc_ref,
                   preds_ref, hnew_ref):
    T, B, _ = xs_ref.shape

    # ---- hoist the small row vectors ONCE (not the big weight matrices: those would
    #      blow the 64-vreg file; the MXU streams them from VMEM inside each dot) ----
    we = we_ref[...]
    be = be_ref[...]
    brz0 = brz0_ref[...]
    bihn0 = bihn0_ref[...]
    bhhn0 = bhhn0_ref[...]
    brz1 = brz1_ref[...]
    bihn1 = bihn1_ref[...]
    bhhn1 = bhhn1_ref[...]
    wfc = wfc_ref[...]
    bfc = bfc_ref[0, 0]            # scalar from SMEM

    # Hidden state in vregs; lanes >= HID are exactly 0 (padded on the host) and stay 0:
    # padded lanes have r = z = sigmoid(0) = 0.5, n = tanh(0) = 0  =>  h' = 0.5 * h = 0.
    h0 = h_init_ref[0]             # (B, GP)
    h1 = h_init_ref[1]             # (B, GP)

    def gru_cell(inp, h, wrz_ref, wihn_ref, whhn_ref, brz, bihn, bhhn):
        # Fused r/z: single MXU pass over [inp | h] (128-aligned lane concat) against the
        # stacked [Wih_rz ; Whh_rz]; r/z input+hidden biases pre-folded into brz.
        ih = jnp.concatenate([inp, h], axis=-1)                                   # (B, 2*GP)
        rz = jax.nn.sigmoid(
            jnp.dot(ih, wrz_ref[...], preferred_element_type=jnp.float32) + brz)  # (B, 2*GP)
        r = rz[:, :GP]
        z = rz[:, GP:]
        gi_n = jnp.dot(inp, wihn_ref[...], preferred_element_type=jnp.float32) + bihn
        gh_n = jnp.dot(h, whhn_ref[...], preferred_element_type=jnp.float32) + bhhn
        n = jnp.tanh(gi_n + r * gh_n)
        return (1.0 - z) * n + z * h

    # ---- T decoder steps fully unrolled in-kernel (T is small and static) ----
    for t in range(T):
        x = xs_ref[t]                                             # (B, 1)
        # embedding: Linear(1 -> EMB) + ReLU (+ dropout = identity); K=1 matmul as VPU
        # broadcast multiply.  Padded lanes stay exactly 0.
        emb = jnp.maximum(x * we + be, 0.0)                       # (B, GP)
        h0 = gru_cell(emb, h0, wrz0_ref, wihn0_ref, whhn0_ref, brz0, bihn0, bhhn0)
        # inter-layer dropout = identity (eval mode)
        h1 = gru_cell(h0, h1, wrz1_ref, wihn1_ref, whhn1_ref, brz1, bihn1, bhhn1)
        # fc head: Linear(HID -> 1) as VPU multiply + XLU lane reduce (no N=1 MXU pass).
        # Store into the VMEM-resident output block; HBM write-back happens once at the end.
        preds_ref[t] = jnp.sum(h1 * wfc, axis=-1, keepdims=True) + bfc           # (B, 1)

    # ---- final hidden written back once (full lane width; wrapper strips padding) ----
    hnew_ref[0] = h0
    hnew_ref[1] = h1


# --------------------------------------------------------------------------------------
# Host-side parameter packing (done ONCE; weights pre-transposed, gate-padded, r/z fused)
# --------------------------------------------------------------------------------------
def pack_params(p):
    def f32(a):
        return np.asarray(a, np.float32)

    def pad_row(v, width):                      # (n,) -> (1, width), zero padded
        out = np.zeros((1, width), np.float32)
        v = f32(v)
        out[0, :v.shape[0]] = v
        return out

    def pack_layer(Wih, Whh, bih, bhh):
        Wih_t = f32(Wih).T                      # (K_in, 3H): cols [r | z | n]
        Whh_t = f32(Whh).T                      # (H,    3H)
        k_in = Wih_t.shape[0]
        # fused r/z weight: rows [0,GP) <- Wih_rz^T, rows [GP,2GP) <- Whh_rz^T;
        # gate output columns at 128-lane offsets (r -> [0,GP), z -> [GP,2GP)); pads zero.
        wrz = np.zeros((2 * GP, 2 * GP), np.float32)
        wrz[:k_in, :HID] = Wih_t[:, 0:HID]
        wrz[:k_in, GP:GP + HID] = Wih_t[:, HID:2 * HID]
        wrz[GP:GP + HID, :HID] = Whh_t[:, 0:HID]
        wrz[GP:GP + HID, GP:GP + HID] = Whh_t[:, HID:2 * HID]
        # n-gate weights (kept separate because of the r * (Whn h + bhn) term)
        wihn = np.zeros((GP, GP), np.float32)
        wihn[:k_in, :HID] = Wih_t[:, 2 * HID:]
        whhn = np.zeros((GP, GP), np.float32)
        whhn[:HID, :HID] = Whh_t[:, 2 * HID:]
        bih = f32(bih)
        bhh = f32(bhh)
        brz = np.zeros((1, 2 * GP), np.float32)
        brz[0, :HID] = bih[:HID] + bhh[:HID]                          # folded r bias
        brz[0, GP:GP + HID] = bih[HID:2 * HID] + bhh[HID:2 * HID]     # folded z bias
        bihn = pad_row(bih[2 * HID:], GP)
        bhhn = pad_row(bhh[2 * HID:], GP)
        return wrz, wihn, whhn, brz, bihn, bhhn

    pk = {"we": jnp.asarray(pad_row(f32(p["We"])[:, 0], GP)),
          "be": jnp.asarray(pad_row(p["be"], GP))}
    for l in (0, 1):
        wrz, wihn, whhn, brz, bihn, bhhn = pack_layer(
            p[f"Wih{l}"], p[f"Whh{l}"], p[f"bih{l}"], p[f"bhh{l}"])
        pk[f"wrz{l}"] = jnp.asarray(wrz)
        pk[f"wihn{l}"] = jnp.asarray(wihn)
        pk[f"whhn{l}"] = jnp.asarray(whhn)
        pk[f"brz{l}"] = jnp.asarray(brz)
        pk[f"bihn{l}"] = jnp.asarray(bihn)
        pk[f"bhhn{l}"] = jnp.asarray(bhhn)
    pk["wfc"] = jnp.asarray(pad_row(f32(p["Wfc"])[0], GP))
    pk["bfc"] = jnp.asarray(f32(p["bfc"]).reshape(1, 1))
    return pk


# --------------------------------------------------------------------------------------
# Wrappers
# --------------------------------------------------------------------------------------
def decoder_forward_steps(xs, hidden, pk):
    """Run T teacher-forced decoder steps inside ONE kernel invocation (no grid)."""
    T, B, _ = xs.shape
    L = hidden.shape[0]
    # Lane-pad the hidden state once on the host side (layout plumbing, zeros in lanes >= HID).
    hidden_pad = jnp.pad(hidden.astype(jnp.float32), ((0, 0), (0, 0), (0, GP - HID)))

    vmem = pl.BlockSpec(memory_space=pltpu.MemorySpace.VMEM)
    smem = pl.BlockSpec(memory_space=pltpu.MemorySpace.SMEM)

    preds, hnew_pad = pl.pallas_call(
        decoder_kernel,
        out_shape=(
            jax.ShapeDtypeStruct((T, B, OUTPUT_SIZE), jnp.float32),
            jax.ShapeDtypeStruct((L, B, GP), jnp.float32),
        ),
        in_specs=[vmem] * 17 + [smem],      # last arg (bfc scalar) lives in SMEM
        out_specs=(vmem, vmem),
    )(xs, hidden_pad,
      pk["we"], pk["be"],
      pk["wrz0"], pk["wihn0"], pk["whhn0"], pk["brz0"], pk["bihn0"], pk["bhhn0"],
      pk["wrz1"], pk["wihn1"], pk["whhn1"], pk["brz1"], pk["bihn1"], pk["bhhn1"],
      pk["wfc"], pk["bfc"])

    return preds, hnew_pad[:, :, :HID]


def decoder_forward(x, hidden, pk):
    """Single decoder step, matching Decoder.forward(x, hidden) (eval mode)."""
    preds, hnew = decoder_forward_steps(x[None], hidden, pk)
    return preds[0], hnew


# --------------------------------------------------------------------------------------
# Parameter init + pure-JAX reference (mirrors the PyTorch module, eval mode)
# --------------------------------------------------------------------------------------
def init_params(key):
    ks = jax.random.split(key, 12)

    def u(k, shape, fan_in):
        bound = 1.0 / np.sqrt(fan_in)
        return jax.random.uniform(k, shape, jnp.float32, -bound, bound)

    return {
        "We": u(ks[0], (EMB, OUTPUT_SIZE), OUTPUT_SIZE),
        "be": u(ks[1], (EMB,), OUTPUT_SIZE),
        "Wih0": u(ks[2], (3 * HID, EMB), HID),
        "Whh0": u(ks[3], (3 * HID, HID), HID),
        "bih0": u(ks[4], (3 * HID,), HID),
        "bhh0": u(ks[5], (3 * HID,), HID),
        "Wih1": u(ks[6], (3 * HID, HID), HID),
        "Whh1": u(ks[7], (3 * HID, HID), HID),
        "bih1": u(ks[8], (3 * HID,), HID),
        "bhh1": u(ks[9], (3 * HID,), HID),
        "Wfc": u(ks[10], (OUTPUT_SIZE, HID), HID),
        "bfc": u(ks[11], (OUTPUT_SIZE,), HID),
    }


def decoder_step_ref(x, hidden, p):
    emb = jnp.maximum(x @ p["We"].T + p["be"], 0.0)

    def cell(inp, h, Wih, Whh, bih, bhh):
        gi = inp @ Wih.T + bih
        gh = h @ Whh.T + bhh
        r = jax.nn.sigmoid(gi[:, :HID] + gh[:, :HID])
        z = jax.nn.sigmoid(gi[:, HID:2 * HID] + gh[:, HID:2 * HID])
        n = jnp.tanh(gi[:, 2 * HID:] + r * gh[:, 2 * HID:])
        return (1.0 - z) * n + z * h

    h0 = cell(emb, hidden[0], p["Wih0"], p["Whh0"], p["bih0"], p["bhh0"])
    h1 = cell(h0, hidden[1], p["Wih1"], p["Whh1"], p["bih1"], p["bhh1"])
    pred = h1 @ p["Wfc"].T + p["bfc"]
    return pred, jnp.stack([h0, h1])


# --------------------------------------------------------------------------------------
if __name__ == "__main__":
    key = jax.random.PRNGKey(0)
    kx, kh, kp = jax.random.split(key, 3)

    B, T = 8, 8
    xs = jax.random.normal(kx, (T, B, OUTPUT_SIZE), jnp.float32)
    hidden = jax.random.normal(kh, (NLAYERS, B, HID), jnp.float32)
    params = init_params(kp)
    packed = pack_params(params)          # pre-transpose / pad / fuse weights once (module state)

    # --- single step (matches Decoder.forward semantics) ---
    pred1, hnew1 = decoder_forward(xs[0], hidden, packed)
    jax.block_until_ready((pred1, hnew1))
    pred1_r, hnew1_r = decoder_step_ref(xs[0], hidden, params)
    assert np.allclose(np.asarray(pred1), np.asarray(pred1_r), atol=1e-4, rtol=1e-4)
    assert np.allclose(np.asarray(hnew1), np.asarray(hnew1_r), atol=1e-4, rtol=1e-4)

    # --- T teacher-forced steps in a single kernel invocation (no per-step grid overhead) ---
    preds, hT = decoder_forward_steps(xs, hidden, packed)
    jax.block_until_ready((preds, hT))

    preds_r = []
    h_r = hidden
    for t in range(T):
        p_r, h_r = decoder_step_ref(xs[t], h_r, params)
        preds_r.append(p_r)
    preds_r = jnp.stack(preds_r)
    assert np.allclose(np.asarray(preds), np.asarray(preds_r), atol=1e-4, rtol=1e-4)
    assert np.allclose(np.asarray(hT), np.asarray(h_r), atol=1e-4, rtol=1e-4)

    print("KERNEL_OK")
</pallas_src>

<mosaic_0001>
module attributes {stable_mosaic.version = 11 : i64} {
  func.func @decoder_kernel(%arg0: memref<1x8x1xf32, #tpu.memory_space<vmem>>, %arg1: memref<2x8x128xf32, #tpu.memory_space<vmem>>, %arg2: memref<1x128xf32, #tpu.memory_space<vmem>>, %arg3: memref<1x128xf32, #tpu.memory_space<vmem>>, %arg4: memref<256x256xf32, #tpu.memory_space<vmem>>, %arg5: memref<128x128xf32, #tpu.memory_space<vmem>>, %arg6: memref<128x128xf32, #tpu.memory_space<vmem>>, %arg7: memref<1x256xf32, #tpu.memory_space<vmem>>, %arg8: memref<1x128xf32, #tpu.memory_space<vmem>>, %arg9: memref<1x128xf32, #tpu.memory_space<vmem>>, %arg10: memref<256x256xf32, #tpu.memory_space<vmem>>, %arg11: memref<128x128xf32, #tpu.memory_space<vmem>>, %arg12: memref<128x128xf32, #tpu.memory_space<vmem>>, %arg13: memref<1x256xf32, #tpu.memory_space<vmem>>, %arg14: memref<1x128xf32, #tpu.memory_space<vmem>>, %arg15: memref<1x128xf32, #tpu.memory_space<vmem>>, %arg16: memref<1x128xf32, #tpu.memory_space<vmem>>, %arg17: memref<1x1xf32, #tpu.memory_space<smem>>, %arg18: memref<1x8x1xf32, #tpu.memory_space<vmem>>, %arg19: memref<2x8x128xf32, #tpu.memory_space<vmem>>) attributes {dimension_semantics = [], scalar_prefetch = 0 : i64, scratch_operands = 0 : i64, tpu.core_type = #tpu.core_type<tc>} {
    %c0 = arith.constant 0 : index
    %c0_0 = arith.constant 0 : index
    %0 = vector.load %arg2[%c0, %c0_0] : memref<1x128xf32, #tpu.memory_space<vmem>>, vector<1x128xf32>
    %c0_1 = arith.constant 0 : index
    %c0_2 = arith.constant 0 : index
    %1 = vector.load %arg3[%c0_1, %c0_2] : memref<1x128xf32, #tpu.memory_space<vmem>>, vector<1x128xf32>
    %c0_3 = arith.constant 0 : index
    %c0_4 = arith.constant 0 : index
    %2 = vector.load %arg7[%c0_3, %c0_4] : memref<1x256xf32, #tpu.memory_space<vmem>>, vector<1x256xf32>
    %c0_5 = arith.constant 0 : index
    %c0_6 = arith.constant 0 : index
    %3 = vector.load %arg8[%c0_5, %c0_6] : memref<1x128xf32, #tpu.memory_space<vmem>>, vector<1x128xf32>
    %c0_7 = arith.constant 0 : index
    %c0_8 = arith.constant 0 : index
    %4 = vector.load %arg9[%c0_7, %c0_8] : memref<1x128xf32, #tpu.memory_space<vmem>>, vector<1x128xf32>
    %c0_9 = arith.constant 0 : index
    %c0_10 = arith.constant 0 : index
    %5 = vector.load %arg13[%c0_9, %c0_10] : memref<1x256xf32, #tpu.memory_space<vmem>>, vector<1x256xf32>
    %c0_11 = arith.constant 0 : index
    %c0_12 = arith.constant 0 : index
    %6 = vector.load %arg14[%c0_11, %c0_12] : memref<1x128xf32, #tpu.memory_space<vmem>>, vector<1x128xf32>
    %c0_13 = arith.constant 0 : index
    %c0_14 = arith.constant 0 : index
    %7 = vector.load %arg15[%c0_13, %c0_14] : memref<1x128xf32, #tpu.memory_space<vmem>>, vector<1x128xf32>
    %c0_15 = arith.constant 0 : index
    %c0_16 = arith.constant 0 : index
    %8 = vector.load %arg16[%c0_15, %c0_16] : memref<1x128xf32, #tpu.memory_space<vmem>>, vector<1x128xf32>
    %c0_17 = arith.constant 0 : index
    %c0_18 = arith.constant 0 : index
    %9 = memref.load %arg17[%c0_17, %c0_18] : memref<1x1xf32, #tpu.memory_space<smem>>
    %c0_19 = arith.constant 0 : index
    %c0_20 = arith.constant 0 : index
    %c0_21 = arith.constant 0 : index
    %10 = vector.load %arg1[%c0_19, %c0_20, %c0_21] : memref<2x8x128xf32, #tpu.memory_space<vmem>>, vector<1x8x128xf32>
    %11 = vector.shape_cast %10 : vector<1x8x128xf32> to vector<8x128xf32>
    %c1 = arith.constant 1 : index
    %c0_22 = arith.constant 0 : index
    %c0_23 = arith.constant 0 : index
    %12 = vector.load %arg1[%c1, %c0_22, %c0_23] : memref<2x8x128xf32, #tpu.memory_space<vmem>>, vector<1x8x128xf32>
    %13 = vector.shape_cast %12 : vector<1x8x128xf32> to vector<8x128xf32>
    %c0_24 = arith.constant 0 : index
    %c0_25 = arith.constant 0 : index
    %c0_26 = arith.constant 0 : index
    %14 = vector.load %arg0[%c0_24, %c0_25, %c0_26] : memref<1x8x1xf32, #tpu.memory_space<vmem>>, vector<1x8x1xf32>
    %15 = vector.shape_cast %14 : vector<1x8x1xf32> to vector<8x1xf32>
    %16 = vector.broadcast %15 : vector<8x1xf32> to vector<8x128xf32>
    %17 = vector.broadcast %0 : vector<1x128xf32> to vector<8x128xf32>
    %18 = arith.mulf %16, %17 : vector<8x128xf32>
    %19 = vector.broadcast %1 : vector<1x128xf32> to vector<8x128xf32>
    %20 = arith.addf %18, %19 : vector<8x128xf32>
    %cst = arith.constant 0.000000e+00 : f32
    %21 = vector.broadcast %cst : f32 to vector<8x128xf32>
    %22 = arith.maximumf %20, %21 : vector<8x128xf32>
    %23 = tpu.concatenate %22, %11 in 1 : vector<8x128xf32>, vector<8x128xf32> -> vector<8x256xf32>
    %c0_27 = arith.constant 0 : index
    %c0_28 = arith.constant 0 : index
    %24 = vector.load %arg4[%c0_27, %c0_28] : memref<256x256xf32, #tpu.memory_space<vmem>>, vector<256x256xf32>
    %cst_29 = arith.constant dense<0.000000e+00> : vector<8x256xf32>
    %25 = tpu.matmul %23, %24, %cst_29 {dimension_numbers = #tpu.dot_dimension_numbers<[1], [0], [0], [1], [0, 0, 1, 1], [], []>} : vector<8x256xf32>, vector<256x256xf32>, vector<8x256xf32> -> vector<8x256xf32>
    %26 = vector.broadcast %2 : vector<1x256xf32> to vector<8x256xf32>
    %27 = arith.addf %25, %26 : vector<8x256xf32>
    %28 = arith.negf %27 : vector<8x256xf32>
    %29 = math.exp %28 : vector<8x256xf32>
    %cst_30 = arith.constant 1.000000e+00 : f32
    %30 = vector.broadcast %cst_30 : f32 to vector<8x256xf32>
    %31 = arith.addf %30, %29 : vector<8x256xf32>
    %32 = arith.divf %30, %31 : vector<8x256xf32>
    %33 = vector.extract_strided_slice %32 {offsets = [0, 0], sizes = [8, 128], strides = [1, 1]} : vector<8x256xf32> to vector<8x128xf32>
    %34 = vector.extract_strided_slice %32 {offsets = [0, 128], sizes = [8, 128], strides = [1, 1]} : vector<8x256xf32> to vector<8x128xf32>
    %c0_31 = arith.constant 0 : index
    %c0_32 = arith.constant 0 : index
    %35 = vector.load %arg5[%c0_31, %c0_32] : memref<128x128xf32, #tpu.memory_space<vmem>>, vector<128x128xf32>
    %cst_33 = arith.constant dense<0.000000e+00> : vector<8x128xf32>
    %36 = tpu.matmul %22, %35, %cst_33 {dimension_numbers = #tpu.dot_dimension_numbers<[1], [0], [0], [1], [0, 0, 1, 1], [], []>} : vector<8x128xf32>, vector<128x128xf32>, vector<8x128xf32> -> vector<8x128xf32>
    %37 = vector.broadcast %3 : vector<1x128xf32> to vector<8x128xf32>
    %38 = arith.addf %36, %37 : vector<8x128xf32>
    %c0_34 = arith.constant 0 : index
    %c0_35 = arith.constant 0 : index
    %39 = vector.load %arg6[%c0_34, %c0_35] : memref<128x128xf32, #tpu.memory_space<vmem>>, vector<128x128xf32>
    %cst_36 = arith.constant dense<0.000000e+00> : vector<8x128xf32>
    %40 = tpu.matmul %11, %39, %cst_36 {dimension_numbers = #tpu.dot_dimension_numbers<[1], [0], [0], [1], [0, 0, 1, 1], [], []>} : vector<8x128xf32>, vector<128x128xf32>, vector<8x128xf32> -> vector<8x128xf32>
    %41 = vector.broadcast %4 : vector<1x128xf32> to vector<8x128xf32>
    %42 = arith.addf %40, %41 : vector<8x128xf32>
    %43 = arith.mulf %33, %42 : vector<8x128xf32>
    %44 = arith.addf %38, %43 : vector<8x128xf32>
    %45 = math.tanh %44 : vector<8x128xf32>
    %cst_37 = arith.constant 1.000000e+00 : f32
    %46 = vector.broadcast %cst_37 : f32 to vector<8x128xf32>
    %47 = arith.subf %46, %34 : vector<8x128xf32>
    %48 = arith.mulf %47, %45 : vector<8x128xf32>
    %49 = arith.mulf %34, %11 : vector<8x128xf32>
    %50 = arith.addf %48, %49 : vector<8x128xf32>
    %51 = tpu.concatenate %50, %13 in 1 : vector<8x128xf32>, vector<8x128xf32> -> vector<8x256xf32>
    %c0_38 = arith.constant 0 : index
    %c0_39 = arith.constant 0 : index
    %52 = vector.load %arg10[%c0_38, %c0_39] : memref<256x256xf32, #tpu.memory_space<vmem>>, vector<256x256xf32>
    %cst_40 = arith.constant dense<0.000000e+00> : vector<8x256xf32>
    %53 = tpu.matmul %51, %52, %cst_40 {dimension_numbers = #tpu.dot_dimension_numbers<[1], [0], [0], [1], [0, 0, 1, 1], [], []>} : vector<8x256xf32>, vector<256x256xf32>, vector<8x256xf32> -> vector<8x256xf32>
    %54 = vector.broadcast %5 : vector<1x256xf32> to vector<8x256xf32>
    %55 = arith.addf %53, %54 : vector<8x256xf32>
    %56 = arith.negf %55 : vector<8x256xf32>
    %57 = math.exp %56 : vector<8x256xf32>
    %cst_41 = arith.constant 1.000000e+00 : f32
    %58 = vector.broadcast %cst_41 : f32 to vector<8x256xf32>
    %59 = arith.addf %58, %57 : vector<8x256xf32>
    %60 = arith.divf %58, %59 : vector<8x256xf32>
    %61 = vector.extract_strided_slice %60 {offsets = [0, 0], sizes = [8, 128], strides = [1, 1]} : vector<8x256xf32> to vector<8x128xf32>
    %62 = vector.extract_strided_slice %60 {offsets = [0, 128], sizes = [8, 128], strides = [1, 1]} : vector<8x256xf32> to vector<8x128xf32>
    %c0_42 = arith.constant 0 : index
    %c0_43 = arith.constant 0 : index
    %63 = vector.load %arg11[%c0_42, %c0_43] : memref<128x128xf32, #tpu.memory_space<vmem>>, vector<128x128xf32>
    %cst_44 = arith.constant dense<0.000000e+00> : vector<8x128xf32>
    %64 = tpu.matmul %50, %63, %cst_44 {dimension_numbers = #tpu.dot_dimension_numbers<[1], [0], [0], [1], [0, 0, 1, 1], [], []>} : vector<8x128xf32>, vector<128x128xf32>, vector<8x128xf32> -> vector<8x128xf32>
    %65 = vector.broadcast %6 : vector<1x128xf32> to vector<8x128xf32>
    %66 = arith.addf %64, %65 : vector<8x128xf32>
    %c0_45 = arith.constant 0 : index
    %c0_46 = arith.constant 0 : index
    %67 = vector.load %arg12[%c0_45, %c0_46] : memref<128x128xf32, #tpu.memory_space<vmem>>, vector<128x128xf32>
    %cst_47 = arith.constant dense<0.000000e+00> : vector<8x128xf32>
    %68 = tpu.matmul %13, %67, %cst_47 {dimension_numbers = #tpu.dot_dimension_numbers<[1], [0], [0], [1], [0, 0, 1, 1], [], []>} : vector<8x128xf32>, vector<128x128xf32>, vector<8x128xf32> -> vector<8x128xf32>
    %69 = vector.broadcast %7 : vector<1x128xf32> to vector<8x128xf32>
    %70 = arith.addf %68, %69 : vector<8x128xf32>
    %71 = arith.mulf %61, %70 : vector<8x128xf32>
    %72 = arith.addf %66, %71 : vector<8x128xf32>
    %73 = math.tanh %72 : vector<8x128xf32>
    %cst_48 = arith.constant 1.000000e+00 : f32
    %74 = vector.broadcast %cst_48 : f32 to vector<8x128xf32>
    %75 = arith.subf %74, %62 : vector<8x128xf32>
    %76 = arith.mulf %75, %73 : vector<8x128xf32>
    %77 = arith.mulf %62, %13 : vector<8x128xf32>
    %78 = arith.addf %76, %77 : vector<8x128xf32>
    %79 = vector.broadcast %8 : vector<1x128xf32> to vector<8x128xf32>
    %80 = arith.mulf %78, %79 : vector<8x128xf32>
    %cst_49 = arith.constant dense<0.000000e+00> : vector<8xf32>
    %81 = vector.multi_reduction <add>, %80, %cst_49 [1] : vector<8x128xf32> to vector<8xf32>
    %82 = vector.shape_cast %81 : vector<8xf32> to vector<8x1xf32>
    %83 = vector.broadcast %9 : f32 to vector<8x1xf32>
    %84 = arith.addf %82, %83 : vector<8x1xf32>
    %c0_50 = arith.constant 0 : index
    %c0_51 = arith.constant 0 : index
    %c0_52 = arith.constant 0 : index
    %85 = vector.load %arg18[%c0_50, %c0_51, %c0_52] : memref<1x8x1xf32, #tpu.memory_space<vmem>>, vector<1x8x1xf32>
    %86 = vector.shape_cast %85 : vector<1x8x1xf32> to vector<8x1xf32>
    %87 = vector.shape_cast %84 : vector<8x1xf32> to vector<1x8x1xf32>
    tpu.vector_store %arg18[%c0_50, %c0_51, %c0_52], %87 {strides = array<i32>} : memref<1x8x1xf32, #tpu.memory_space<vmem>>, vector<1x8x1xf32>,
    %c0_53 = arith.constant 0 : index
    %c0_54 = arith.constant 0 : index
    %c0_55 = arith.constant 0 : index
    %88 = vector.load %arg19[%c0_53, %c0_54, %c0_55] : memref<2x8x128xf32, #tpu.memory_space<vmem>>, vector<1x8x128xf32>
    %89 = vector.shape_cast %88 : vector<1x8x128xf32> to vector<8x128xf32>
    %90 = vector.shape_cast %50 : vector<8x128xf32> to vector<1x8x128xf32>
    tpu.vector_store %arg19[%c0_53, %c0_54, %c0_55], %90 {strides = array<i32>} : memref<2x8x128xf32, #tpu.memory_space<vmem>>, vector<1x8x128xf32>,
    %c1_56 = arith.constant 1 : index
    %c0_57 = arith.constant 0 : index
    %c0_58 = arith.constant 0 : index
    %91 = vector.load %arg19[%c1_56, %c0_57, %c0_58] : memref<2x8x128xf32, #tpu.memory_space<vmem>>, vector<1x8x128xf32>
    %92 = vector.shape_cast %91 : vector<1x8x128xf32> to vector<8x128xf32>
    %93 = vector.shape_cast %78 : vector<8x128xf32> to vector<1x8x128xf32>
    tpu.vector_store %arg19[%c1_56, %c0_57, %c0_58], %93 {strides = array<i32>} : memref<2x8x128xf32, #tpu.memory_space<vmem>>, vector<1x8x128xf32>,
    return
  }
}

</mosaic_0001>

<llo_original>
// kernel: tpu_custom_call.1
$region0: #{tpu_custom_call.1}
  #allocation0 [shape = 'u32[]', space=smem, size = 0x4, offset = 0x4, fixed_abs, tag = 'smem constant byte address 0x4 - core index']
  #allocation1 [shape = 'u32[144,128]{1,0:T(1,128)}', space=vmem, size = 0x12000, scoped, tag = 'internal scratch']
  #allocation2 [shape = 'f32[1,1]{1,0:T(1,128)S(6)}', space=smem, size = 0x200, scoped, tag = 'scoped memory for tpu_custom_call.1']
  %s0 = inlined_call_operand.vmem [shape: f32[1,8,1], index: 0, kind: input, shape index: {}]
  %s1 = inlined_call_operand.hbm [shape: f32[2,8,128], index: 1, kind: input, shape index: {}]
  %s2 = inlined_call_operand.vmem [shape: f32[1,128], index: 2, kind: input, shape index: {}]
  %s3 = inlined_call_operand.vmem [shape: f32[1,128], index: 3, kind: input, shape index: {}]
  %s4 = inlined_call_operand.hbm [shape: f32[256,256], index: 4, kind: input, shape index: {}]
  %s5 = inlined_call_operand.hbm [shape: f32[128,128], index: 5, kind: input, shape index: {}]
  %s6 = inlined_call_operand.hbm [shape: f32[128,128], index: 6, kind: input, shape index: {}]
  %s7 = inlined_call_operand.vmem [shape: f32[1,256], index: 7, kind: input, shape index: {}]
  %s8 = inlined_call_operand.vmem [shape: f32[1,128], index: 8, kind: input, shape index: {}]
  %s9 = inlined_call_operand.vmem [shape: f32[1,128], index: 9, kind: input, shape index: {}]
  %s10 = inlined_call_operand.hbm [shape: f32[256,256], index: 10, kind: input, shape index: {}]
  %s11 = inlined_call_operand.hbm [shape: f32[128,128], index: 11, kind: input, shape index: {}]
  %s12 = inlined_call_operand.hbm [shape: f32[128,128], index: 12, kind: input, shape index: {}]
  %s13 = inlined_call_operand.vmem [shape: f32[1,256], index: 13, kind: input, shape index: {}]
  %s14 = inlined_call_operand.vmem [shape: f32[1,128], index: 14, kind: input, shape index: {}]
  %s15 = inlined_call_operand.vmem [shape: f32[1,128], index: 15, kind: input, shape index: {}]
  %s16 = inlined_call_operand.vmem [shape: f32[1,128], index: 16, kind: input, shape index: {}]
  %s17 = inlined_call_operand.<no memory space> [shape: f32[1,1], index: 17, kind: input, shape index: {}]
  %s18 = inlined_call_operand.vmem [shape: f32[1,8,1], index: 18, kind: output, shape index: {0}]
  %s19 = inlined_call_operand.hbm [shape: f32[2,8,128], index: 19, kind: output, shape index: {1}]
  %20 = xla_tuple %s18, %s19
  %s21 = sld [smem:[#allocation0]]
  $region118: #{tpu_custom_call.1} parent=0
    _
  %s23 = ssub.s32 1, %s21
  %s24 = scalar_select 0, %s23, %s21
  %25 = sst [smem:[#allocation2]] %s17
  $region1: #{tpu_custom_call.1} parent=0
    #allocation3 [shape = 'u8[8192]{0}', space=vmem, size = 0x2000, scoped, tag = 'input window, operand 1, single buffered']
    #allocation4 [shape = 's32[1]{0}', space=sflag, size = 0x4, scoped, tag = 'scoped memory for tpu_custom_call.1']
    #allocation5 [shape = 's32[1]{0}', space=sflag, size = 0x4, scoped, tag = 'scoped memory for tpu_custom_call.1']
    #allocation6 [shape = 'u8[262144]{0}', space=vmem, size = 0x40000, scoped, tag = 'input window, operand 4, single buffered']
    #allocation7 [shape = 's32[1]{0}', space=sflag, size = 0x4, scoped, tag = 'scoped memory for tpu_custom_call.1']
    #allocation8 [shape = 'u8[65536]{0}', space=vmem, size = 0x10000, scoped, tag = 'input window, operand 5, single buffered']
    #allocation9 [shape = 'u8[65536]{0}', space=vmem, size = 0x10000, scoped, tag = 'input window, operand 6, single buffered']
    #allocation10 [shape = 's32[1]{0}', space=sflag, size = 0x4, scoped, tag = 'scoped memory for tpu_custom_call.1']
    #allocation11 [shape = 'u8[262144]{0}', space=vmem, size = 0x40000, scoped, tag = 'input window, operand 10, single buffered']
    #allocation12 [shape = 'u8[65536]{0}', space=vmem, size = 0x10000, scoped, tag = 'input window, operand 11, single buffered']
    #allocation13 [shape = 's32[1]{0}', space=sflag, size = 0x4, scoped, tag = 'scoped memory for tpu_custom_call.1']
    #allocation14 [shape = 'u8[65536]{0}', space=vmem, size = 0x10000, scoped, tag = 'input window, operand 12, single buffered']
    #allocation15 [shape = 'u8[8192]{0}', space=vmem, size = 0x2000, scoped, tag = 'output window, operand 1, single buffered']
    %26 = vsyncpa [#allocation4], 0
    %27 = vsyncpa [#allocation7], 0
    %28 = vsyncpa [#allocation10], 0
    %29 = vsyncpa [#allocation13], 0
    %30 = vsyncpa [#allocation5], 0
    // Predicated region
    $region2: #{tpu_custom_call.1} parent=1 // pred_check
      _
    $region3: #{tpu_custom_call.1} parent=1 // pred_check_branch
      %32 = sbr.rel (0) target = $region5
    $region4: #{tpu_custom_call.1} parent=1 // pred_region
      _
    $region5: #{tpu_custom_call.1} parent=1 // pred_fallthru
      _
    // Predicated region
    $region6: #{tpu_custom_call.1} parent=1 // pred_check
      _
    $region7: #{tpu_custom_call.1} parent=1 // pred_check_branch
      %34 = sbr.rel (0) target = $region9
    $region8: #{tpu_custom_call.1} parent=1 // pred_region
      %s36 = ssub.s32 256, 256
      %37 = vsyncadd [#allocation4], %s36
      %s38 = sshll.u32 [#allocation3], 4
      %s39 = int_to_ptr.vmem [resolvable:$true] %s38
      %44 = dma.hbm_to_vmem [thread:$0]  %s1, 256, %s39, [#allocation4], 128, 128, 8
    $region9: #{tpu_custom_call.1} parent=1 // pred_fallthru
      _
    // Predicated region
    $region10: #{tpu_custom_call.1} parent=1 // pred_check
      _
    $region11: #{tpu_custom_call.1} parent=1 // pred_check_branch
      %46 = sbr.rel (0) target = $region13
    $region12: #{tpu_custom_call.1} parent=1 // pred_region
      _
    $region13: #{tpu_custom_call.1} parent=1 // pred_fallthru
      _
    // Predicated region
    $region14: #{tpu_custom_call.1} parent=1 // pred_check
      _
    $region15: #{tpu_custom_call.1} parent=1 // pred_check_branch
      %48 = sbr.rel (0) target = $region17
    $region16: #{tpu_custom_call.1} parent=1 // pred_region
      _
    $region17: #{tpu_custom_call.1} parent=1 // pred_fallthru
      _
    // Predicated region
    $region18: #{tpu_custom_call.1} parent=1 // pred_check
      _
    $region19: #{tpu_custom_call.1} parent=1 // pred_check_branch
      %50 = sbr.rel (0) target = $region21
    $region20: #{tpu_custom_call.1} parent=1 // pred_region
      %s52 = ssub.s32 8192, 8192
      %53 = vsyncadd [#allocation7], %s52
      %s54 = sshll.u32 [#allocation6], 4
      %s55 = int_to_ptr.vmem [resolvable:$true] %s54
      %60 = dma.hbm_to_vmem [thread:$0]  %s4, 8192, %s55, [#allocation7], 256, 256, 16
    $region21: #{tpu_custom_call.1} parent=1 // pred_fallthru
      _
    // Predicated region
    $region22: #{tpu_custom_call.1} parent=1 // pred_check
      _
    $region23: #{tpu_custom_call.1} parent=1 // pred_check_branch
      %62 = sbr.rel (0) target = $region25
    $region24: #{tpu_custom_call.1} parent=1 // pred_region
      %s64 = ssub.s32 2048, 2048
      %65 = vsyncadd [#allocation7], %s64
      %s66 = sshll.u32 [#allocation8], 4
      %s67 = int_to_ptr.vmem [resolvable:$true] %s66
      %72 = dma.hbm_to_vmem [thread:$0]  %s5, 2048, %s67, [#allocation7], 128, 128, 8
    $region25: #{tpu_custom_call.1} parent=1 // pred_fallthru
      _
    // Predicated region
    $region26: #{tpu_custom_call.1} parent=1 // pred_check
      _
    $region27: #{tpu_custom_call.1} parent=1 // pred_check_branch
      %74 = sbr.rel (0) target = $region29
    $region28: #{tpu_custom_call.1} parent=1 // pred_region
      %s76 = ssub.s32 2048, 2048
      %77 = vsyncadd [#allocation10], %s76
      %s78 = sshll.u32 [#allocation9], 4
      %s79 = int_to_ptr.vmem [resolvable:$true] %s78
      %84 = dma.hbm_to_vmem [thread:$0]  %s6, 2048, %s79, [#allocation10], 128, 128, 8
    $region29: #{tpu_custom_call.1} parent=1 // pred_fallthru
      _
    // Predicated region
    $region30: #{tpu_custom_call.1} parent=1 // pred_check
      _
    $region31: #{tpu_custom_call.1} parent=1 // pred_check_branch
      %86 = sbr.rel (0) target = $region33
    $region32: #{tpu_custom_call.1} parent=1 // pred_region
      _
    $region33: #{tpu_custom_call.1} parent=1 // pred_fallthru
      _
    // Predicated region
    $region34: #{tpu_custom_call.1} parent=1 // pred_check
      _
    $region35: #{tpu_custom_call.1} parent=1 // pred_check_branch
      %88 = sbr.rel (0) target = $region37
    $region36: #{tpu_custom_call.1} parent=1 // pred_region
      _
    $region37: #{tpu_custom_call.1} parent=1 // pred_fallthru
      _
    // Predicated region
    $region38: #{tpu_custom_call.1} parent=1 // pred_check
      _
    $region39: #{tpu_custom_call.1} parent=1 // pred_check_branch
      %90 = sbr.rel (0) target = $region41
    $region40: #{tpu_custom_call.1} parent=1 // pred_region
      _
    $region41: #{tpu_custom_call.1} parent=1 // pred_fallthru
      _
    // Predicated region
    $region42: #{tpu_custom_call.1} parent=1 // pred_check
      _
    $region43: #{tpu_custom_call.1} parent=1 // pred_check_branch
      %92 = sbr.rel (0) target = $region45
    $region44: #{tpu_custom_call.1} parent=1 // pred_region
      %s94 = ssub.s32 8192, 8192
      %95 = vsyncadd [#allocation10], %s94
      %s96 = sshll.u32 [#allocation11], 4
      %s97 = int_to_ptr.vmem [resolvable:$true] %s96
      %102 = dma.hbm_to_vmem [thread:$0]  %s10, 8192, %s97, [#allocation10], 256, 256, 16
    $region45: #{tpu_custom_call.1} parent=1 // pred_fallthru
      _
    // Predicated region
    $region46: #{tpu_custom_call.1} parent=1 // pred_check
      _
    $region47: #{tpu_custom_call.1} parent=1 // pred_check_branch
      %104 = sbr.rel (0) target = $region49
    $region48: #{tpu_custom_call.1} parent=1 // pred_region
      %s106 = ssub.s32 2048, 2048
      %107 = vsyncadd [#allocation13], %s106
      %s108 = sshll.u32 [#allocation12], 4
      %s109 = int_to_ptr.vmem [resolvable:$true] %s108
      %114 = dma.hbm_to_vmem [thread:$0]  %s11, 2048, %s109, [#allocation13], 128, 128, 8
    $region49: #{tpu_custom_call.1} parent=1 // pred_fallthru
      _
    // Predicated region
    $region50: #{tpu_custom_call.1} parent=1 // pred_check
      _
    $region51: #{tpu_custom_call.1} parent=1 // pred_check_branch
      %116 = sbr.rel (0) target = $region53
    $region52: #{tpu_custom_call.1} parent=1 // pred_region
      %s118 = ssub.s32 2048, 2048
      %119 = vsyncadd [#allocation13], %s118
      %s120 = sshll.u32 [#allocation14], 4
      %s121 = int_to_ptr.vmem [resolvable:$true] %s120
      %126 = dma.hbm_to_vmem [thread:$0]  %s12, 2048, %s121, [#allocation13], 128, 128, 8
    $region53: #{tpu_custom_call.1} parent=1 // pred_fallthru
      _
    // Predicated region
    $region54: #{tpu_custom_call.1} parent=1 // pred_check
      _
    $region55: #{tpu_custom_call.1} parent=1 // pred_check_branch
      %128 = sbr.rel (0) target = $region57
    $region56: #{tpu_custom_call.1} parent=1 // pred_region
      _
    $region57: #{tpu_custom_call.1} parent=1 // pred_fallthru
      _
    // Predicated region
    $region58: #{tpu_custom_call.1} parent=1 // pred_check
      _
    $region59: #{tpu_custom_call.1} parent=1 // pred_check_branch
      %130 = sbr.rel (0) target = $region61
    $region60: #{tpu_custom_call.1} parent=1 // pred_region
      _
    $region61: #{tpu_custom_call.1} parent=1 // pred_fallthru
      _
    // Predicated region
    $region62: #{tpu_custom_call.1} parent=1 // pred_check
      _
    $region63: #{tpu_custom_call.1} parent=1 // pred_check_branch
      %132 = sbr.rel (0) target = $region65
    $region64: #{tpu_custom_call.1} parent=1 // pred_region
      _
    $region65: #{tpu_custom_call.1} parent=1 // pred_fallthru
      _
    // Predicated region
    $region66: #{tpu_custom_call.1} parent=1 // pred_check
      _
    $region67: #{tpu_custom_call.1} parent=1 // pred_check_branch
      %134 = sbr.rel (0) target = $region69
    $region68: #{tpu_custom_call.1} parent=1 // pred_region
      _
    $region69: #{tpu_custom_call.1} parent=1 // pred_fallthru
      _
    // Predicated region
    $region70: #{tpu_custom_call.1} parent=1 // pred_check
      _
    $region71: #{tpu_custom_call.1} parent=1 // pred_check_branch
      %136 = sbr.rel (0) target = $region73
    $region72: #{tpu_custom_call.1} parent=1 // pred_region
      _
    $region73: #{tpu_custom_call.1} parent=1 // pred_fallthru
      _
    // Predicated region
    $region74: #{tpu_custom_call.1} parent=1 // pred_check
      _
    $region75: #{tpu_custom_call.1} parent=1 // pred_check_branch
      %138 = sbr.rel (0) target = $region77
    $region76: #{tpu_custom_call.1} parent=1 // pred_region
      %139 = dma.done [#allocation4], 256
    $region77: #{tpu_custom_call.1} parent=1 // pred_fallthru
      _
    // Predicated region
    $region78: #{tpu_custom_call.1} parent=1 // pred_check
      _
    $region79: #{tpu_custom_call.1} parent=1 // pred_check_branch
      %141 = sbr.rel (0) target = $region81
    $region80: #{tpu_custom_call.1} parent=1 // pred_region
      %142 = dma.done [#allocation7], 8192
    $region81: #{tpu_custom_call.1} parent=1 // pred_fallthru
      _
    // Predicated region
    $region82: #{tpu_custom_call.1} parent=1 // pred_check
      _
    $region83: #{tpu_custom_call.1} parent=1 // pred_check_branch
      %144 = sbr.rel (0) target = $region85
    $region84: #{tpu_custom_call.1} parent=1 // pred_region
      %145 = dma.done [#allocation7], 2048
    $region85: #{tpu_custom_call.1} parent=1 // pred_fallthru
      _
    // Predicated region
    $region86: #{tpu_custom_call.1} parent=1 // pred_check
      _
    $region87: #{tpu_custom_call.1} parent=1 // pred_check_branch
      %147 = sbr.rel (0) target = $region89
    $region88: #{tpu_custom_call.1} parent=1 // pred_region
      %148 = dma.done [#allocation10], 2048
    $region89: #{tpu_custom_call.1} parent=1 // pred_fallthru
      _
    // Predicated region
    $region90: #{tpu_custom_call.1} parent=1 // pred_check
      _
    $region91: #{tpu_custom_call.1} parent=1 // pred_check_branch
      %150 = sbr.rel (0) target = $region93
    $region92: #{tpu_custom_call.1} parent=1 // pred_region
      %151 = dma.done [#allocation10], 8192
    $region93: #{tpu_custom_call.1} parent=1 // pred_fallthru
      _
    // Predicated region
    $region94: #{tpu_custom_call.1} parent=1 // pred_check
      _
    $region95: #{tpu_custom_call.1} parent=1 // pred_check_branch
      %153 = sbr.rel (0) target = $region97
    $region96: #{tpu_custom_call.1} parent=1 // pred_region
      %154 = dma.done [#allocation13], 2048
    $region97: #{tpu_custom_call.1} parent=1 // pred_fallthru
      _
    // Predicated region
    $region98: #{tpu_custom_call.1} parent=1 // pred_check
      _
    $region99: #{tpu_custom_call.1} parent=1 // pred_check_branch
      %156 = sbr.rel (0) target = $region101
    $region100: #{tpu_custom_call.1} parent=1 // pred_region
      %157 = dma.done [#allocation13], 2048
    $region101: #{tpu_custom_call.1} parent=1 // pred_fallthru
      _
    %v158 = vld [vmem:[%s2] sm:$0x1]
    %v159 = vld [vmem:[%s3] sm:$0x1]
    %v160 = vld [vmem:[%s7] sm:$0x3]
    %v161 = vld [vmem:[%s8] sm:$0x1]
    %v162 = vld [vmem:[%s9] sm:$0x1]
    %v163 = vld [vmem:[%s13] sm:$0x3]
    %v164 = vld [vmem:[%s14] sm:$0x1]
    %v165 = vld [vmem:[%s15] sm:$0x1]
    %v166 = vld [vmem:[%s16] sm:$0x1]
    %s167 = sld [smem:[#allocation2]]
    %v168 = vld [vmem:[#allocation3] sm:$0xff]
    %s169 = scalar_lea.vmem [#allocation3], 8
    %v170 = vld [vmem:[%s169] sm:$0xff]
    %v171 = vld [vmem:[%s0] sm:$0xff]
    %173 = vset.pattern.permute.xlu0 0
    %174 = vperm.xlu0 %173, %v171
    %v175 = vpop.permute.xlu0 %174
    %v178 = vlaneseq
    %v179 = vshrl.u32 %v178, 7
    %v180 = vsub.s32 0, %v179
    %v181 = vrot.slane %v158, %v180
    %v183 = vmul.f32 %v175, %v181
    %v185 = vlaneseq
    %v186 = vshrl.u32 %v185, 7
    %v187 = vsub.s32 0, %v186
    %v188 = vrot.slane %v159, %v187
    %v190 = vadd.f32 %v183, %v188
    %v191 = vmax.f32 %v190, 0.0
    %v192 = vld [vmem:[#allocation6] sm:$0xff]
    %v193 = vld [vmem:[#allocation6 + $0x8] sm:$0xff]
    %v194 = vld [vmem:[#allocation6 + $0x10] sm:$0xff]
    %v195 = vld [vmem:[#allocation6 + $0x18] sm:$0xff]
    %v196 = vld [vmem:[#allocation6 + $0x20] sm:$0xff]
    %v197 = vld [vmem:[#allocation6 + $0x28] sm:$0xff]
    %v198 = vld [vmem:[#allocation6 + $0x30] sm:$0xff]
    %v199 = vld [vmem:[#allocation6 + $0x38] sm:$0xff]
    %v200 = vld [vmem:[#allocation6 + $0x40] sm:$0xff]
    %v201 = vld [vmem:[#allocation6 + $0x48] sm:$0xff]
    %v202 = vld [vmem:[#allocation6 + $0x50] sm:$0xff]
    %v203 = vld [vmem:[#allocation6 + $0x58] sm:$0xff]
    %v204 = vld [vmem:[#allocation6 + $0x60] sm:$0xff]
    %v205 = vld [vmem:[#allocation6 + $0x68] sm:$0xff]
    %v206 = vld [vmem:[#allocation6 + $0x70] sm:$0xff]
    %v207 = vld [vmem:[#allocation6 + $0x78] sm:$0xff]
    %v208 = vld [vmem:[#allocation6 + $0x80] sm:$0xff]
    %v209 = vld [vmem:[#allocation6 + $0x88] sm:$0xff]
    %v210 = vld [vmem:[#allocation6 + $0x90] sm:$0xff]
    %v211 = vld [vmem:[#allocation6 + $0x98] sm:$0xff]
    %v212 = vld [vmem:[#allocation6 + $0xa0] sm:$0xff]
    %v213 = vld [vmem:[#allocation6 + $0xa8] sm:$0xff]
    %v214 = vld [vmem:[#allocation6 + $0xb0] sm:$0xff]
    %v215 = vld [vmem:[#allocation6 + $0xb8] sm:$0xff]
    %v216 = vld [vmem:[#allocation6 + $0xc0] sm:$0xff]
    %v217 = vld [vmem:[#allocation6 + $0xc8] sm:$0xff]
    %v218 = vld [vmem:[#allocation6 + $0xd0] sm:$0xff]
    %v219 = vld [vmem:[#allocation6 + $0xd8] sm:$0xff]
    %v220 = vld [vmem:[#allocation6 + $0xe0] sm:$0xff]
    %v221 = vld [vmem:[#allocation6 + $0xe8] sm:$0xff]
    %v222 = vld [vmem:[#allocation6 + $0xf0] sm:$0xff]
    %v223 = vld [vmem:[#allocation6 + $0xf8] sm:$0xff]
    %v224 = vld [vmem:[#allocation6 + $0x100] sm:$0xff]
    %v225 = vld [vmem:[#allocation6 + $0x108] sm:$0xff]
    %v226 = vld [vmem:[#allocation6 + $0x110] sm:$0xff]
    %v227 = vld [vmem:[#allocation6 + $0x118] sm:$0xff]
    %v228 = vld [vmem:[#allocation6 + $0x120] sm:$0xff]
    %v229 = vld [vmem:[#allocation6 + $0x128] sm:$0xff]
    %v230 = vld [vmem:[#allocation6 + $0x130] sm:$0xff]
    %v231 = vld [vmem:[#allocation6 + $0x138] sm:$0xff]
    %v232 = vld [vmem:[#allocation6 + $0x140] sm:$0xff]
    %v233 = vld [vmem:[#allocation6 + $0x148] sm:$0xff]
    %v234 = vld [vmem:[#allocation6 + $0x150] sm:$0xff]
    %v235 = vld [vmem:[#allocation6 + $0x158] sm:$0xff]
    %v236 = vld [vmem:[#allocation6 + $0x160] sm:$0xff]
    %v237 = vld [vmem:[#allocation6 + $0x168] sm:$0xff]
    %v238 = vld [vmem:[#allocation6 + $0x170] sm:$0xff]
    %v239 = vld [vmem:[#allocation6 + $0x178] sm:$0xff]
    %v240 = vld [vmem:[#allocation6 + $0x180] sm:$0xff]
    %v241 = vld [vmem:[#allocation6 + $0x188] sm:$0xff]
    %v242 = vld [vmem:[#allocation6 + $0x190] sm:$0xff]
    %v243 = vld [vmem:[#allocation6 + $0x198] sm:$0xff]
    %v244 = vld [vmem:[#allocation6 + $0x1a0] sm:$0xff]
    %v245 = vld [vmem:[#allocation6 + $0x1a8] sm:$0xff]
    %v246 = vld [vmem:[#allocation6 + $0x1b0] sm:$0xff]
    %v247 = vld [vmem:[#allocation6 + $0x1b8] sm:$0xff]
    %v248 = vld [vmem:[#allocation6 + $0x1c0] sm:$0xff]
    %v249 = vld [vmem:[#allocation6 + $0x1c8] sm:$0xff]
    %v250 = vld [vmem:[#allocation6 + $0x1d0] sm:$0xff]
    %v251 = vld [vmem:[#allocation6 + $0x1d8] sm:$0xff]
    %v252 = vld [vmem:[#allocation6 + $0x1e0] sm:$0xff]
    %v253 = vld [vmem:[#allocation6 + $0x1e8] sm:$0xff]
    %v254 = vld [vmem:[#allocation6 + $0x1f0] sm:$0xff]
    %v255 = vld [vmem:[#allocation6 + $0x1f8] sm:$0xff]
    %v257 = vlaneseq
    %v258 = vshrl.u32 %v257, 7
    %v259 = vsub.s32 0, %v258
    %v260 = vrot.slane %v160, %v259
    %v261 = vlaneseq
    %v262 = vshrl.u32 %v261, 7
    %v263 = vsub.s32 1, %v262
    %v264 = vrot.slane %v160, %v263
    %267 = vmatprep.subr.mxu0 %v223
    %268 = vmatpush1.msra.mxu0 %v222
    %269 = vmatprep.subr.mxu0 %v221
    %270 = vmatpush1.msra.mxu0 %v220
    %271 = vmatprep.subr.mxu0 %v219
    %272 = vmatpush1.msra.mxu0 %v218
    %273 = vmatprep.subr.mxu0 %v217
    %274 = vmatpush1.msra.mxu0 %v216
    %275 = vmatprep.subr.mxu0 %v215
    %276 = vmatpush1.msra.mxu0 %v214
    %277 = vmatprep.subr.mxu0 %v213
    %278 = vmatpush1.msra.mxu0 %v212
    %279 = vmatprep.subr.mxu0 %v211
    %280 = vmatpush1.msra.mxu0 %v210
    %281 = vmatprep.subr.mxu0 %v209
    %282 = vmatpush1.msra.mxu0 %v208
    %283 = vmatprep.subr.mxu0 %v207
    %284 = vmatpush1.msra.mxu0 %v206
    %285 = vmatprep.subr.mxu0 %v205
    %286 = vmatpush1.msra.mxu0 %v204
    %287 = vmatprep.subr.mxu0 %v203
    %288 = vmatpush1.msra.mxu0 %v202
    %289 = vmatprep.subr.mxu0 %v201
    %290 = vmatpush1.msra.mxu0 %v200
    %291 = vmatprep.subr.mxu0 %v199
    %292 = vmatpush1.msra.mxu0 %v198
    %293 = vmatprep.subr.mxu0 %v197
    %294 = vmatpush1.msra.mxu0 %v196
    %295 = vmatprep.subr.mxu0 %v195
    %296 = vmatpush1.msra.mxu0 %v194
    %297 = vmatprep.subr.mxu0 %v193
    %298 = vmatpush1.msra.mxu0 %v192
    %299 = vmatprep.subr.mxu0 %v255
    %300 = vmatpush2.msra.mxu0 %v254
    %301 = vmatprep.subr.mxu0 %v253
    %302 = vmatpush2.msra.mxu0 %v252
    %303 = vmatprep.subr.mxu0 %v251
    %304 = vmatpush2.msra.mxu0 %v250
    %305 = vmatprep.subr.mxu0 %v249
    %306 = vmatpush2.msra.mxu0 %v248
    %307 = vmatprep.subr.mxu0 %v247
    %308 = vmatpush2.msra.mxu0 %v246
    %309 = vmatprep.subr.mxu0 %v245
    %310 = vmatpush2.msra.mxu0 %v244
    %311 = vmatprep.subr.mxu0 %v243
    %312 = vmatpush2.msra.mxu0 %v242
    %313 = vmatprep.subr.mxu0 %v241
    %314 = vmatpush2.msra.mxu0 %v240
    %315 = vmatprep.subr.mxu0 %v239
    %316 = vmatpush2.msra.mxu0 %v238
    %317 = vmatprep.subr.mxu0 %v237
    %318 = vmatpush2.msra.mxu0 %v236
    %319 = vmatprep.subr.mxu0 %v235
    %320 = vmatpush2.msra.mxu0 %v234
    %321 = vmatprep.subr.mxu0 %v233
    %322 = vmatpush2.msra.mxu0 %v232
    %323 = vmatprep.subr.mxu0 %v231
    %324 = vmatpush2.msra.mxu0 %v230
    %325 = vmatprep.subr.mxu0 %v229
    %326 = vmatpush2.msra.mxu0 %v228
    %327 = vmatprep.subr.mxu0 %v227
    %328 = vmatpush2.msra.mxu0 %v226
    %329 = vmatprep.subr.mxu0 %v225
    %330 = vmatpush2.msra.mxu0 %v224
    %331 = vmatprep.mubr.f32.mxu0 %v168
    %332 = vmatmul.mubr.f32.gmra.mxu0 %v191
    %v333 = vpop.f32.mrf.mxu0
    %v334 = vadd.f32 %v260, %v333
    %v335 = vpop.f32.mrf.mxu0
    %v336 = vadd.f32 %v264, %v335
    %337 = vdwg.mxu0
    %v338 = vxor.u32 %v334, 2147483648
    %v339 = vxor.u32 %v336, 2147483648
    %v340 = vmul.f32 %v338, 1.442695
    %v341 = vpow.pop %v340
    %v342 = vmul.f32 %v339, 1.442695
    %v343 = vpow.pop %v342
    %v344 = vadd.f32 %v341, 1.0
    %v345 = vadd.f32 %v343, 1.0
    %v346 = vrcp.pop %v344
    %v347 = vmul.f32 1.0, %v346
    %v348 = vrcp.pop %v345
    %v349 = vmul.f32 1.0, %v348
    %v350 = vld [vmem:[#allocation8] sm:$0xff]
    %v351 = vld [vmem:[#allocation8 + $0x8] sm:$0xff]
    %v352 = vld [vmem:[#allocation8 + $0x10] sm:$0xff]
    %v353 = vld [vmem:[#allocation8 + $0x18] sm:$0xff]
    %v354 = vld [vmem:[#allocation8 + $0x20] sm:$0xff]
    %v355 = vld [vmem:[#allocation8 + $0x28] sm:$0xff]
    %v356 = vld [vmem:[#allocation8 + $0x30] sm:$0xff]
    %v357 = vld [vmem:[#allocation8 + $0x38] sm:$0xff]
    %v358 = vld [vmem:[#allocation8 + $0x40] sm:$0xff]
    %v359 = vld [vmem:[#allocation8 + $0x48] sm:$0xff]
    %v360 = vld [vmem:[#allocation8 + $0x50] sm:$0xff]
    %v361 = vld [vmem:[#allocation8 + $0x58] sm:$0xff]
    %v362 = vld [vmem:[#allocation8 + $0x60] sm:$0xff]
    %v363 = vld [vmem:[#allocation8 + $0x68] sm:$0xff]
    %v364 = vld [vmem:[#allocation8 + $0x70] sm:$0xff]
    %v365 = vld [vmem:[#allocation8 + $0x78] sm:$0xff]
    %v367 = vlaneseq
    %v368 = vshrl.u32 %v367, 7
    %v369 = vsub.s32 0, %v368
    %v370 = vrot.slane %v161, %v369
    %372 = vmatprep.subr.mxu0 0.0
    %373 = vmatpush1.msra.mxu0 %v365
    %374 = vmatprep.subr.mxu0 0.0
    %375 = vmatpush1.msra.mxu0 %v364
    %376 = vmatprep.subr.mxu0 0.0
    %377 = vmatpush1.msra.mxu0 %v363
    %378 = vmatprep.subr.mxu0 0.0
    %379 = vmatpush1.msra.mxu0 %v362
    %380 = vmatprep.subr.mxu0 0.0
    %381 = vmatpush1.msra.mxu0 %v361
    %382 = vmatprep.subr.mxu0 0.0
    %383 = vmatpush1.msra.mxu0 %v360
    %384 = vmatprep.subr.mxu0 0.0
    %385 = vmatpush1.msra.mxu0 %v359
    %386 = vmatprep.subr.mxu0 0.0
    %387 = vmatpush1.msra.mxu0 %v358
    %388 = vmatprep.subr.mxu0 0.0
    %389 = vmatpush1.msra.mxu0 %v357
    %390 = vmatprep.subr.mxu0 0.0
    %391 = vmatpush1.msra.mxu0 %v356
    %392 = vmatprep.subr.mxu0 0.0
    %393 = vmatpush1.msra.mxu0 %v355
    %394 = vmatprep.subr.mxu0 0.0
    %395 = vmatpush1.msra.mxu0 %v354
    %396 = vmatprep.subr.mxu0 0.0
    %397 = vmatpush1.msra.mxu0 %v353
    %398 = vmatprep.subr.mxu0 0.0
    %399 = vmatpush1.msra.mxu0 %v352
    %400 = vmatprep.subr.mxu0 0.0
    %401 = vmatpush1.msra.mxu0 %v351
    %402 = vmatprep.subr.mxu0 0.0
    %403 = vmatpush1.msra.mxu0 %v350
    %404 = vmatprep.subr.mxu0 0.0
    %405 = vmatpush2.msra.mxu0 0.0
    %406 = vmatprep.subr.mxu0 0.0
    %407 = vmatpush2.msra.mxu0 0.0
    %408 = vmatprep.subr.mxu0 0.0
    %409 = vmatpush2.msra.mxu0 0.0
    %410 = vmatprep.subr.mxu0 0.0
    %411 = vmatpush2.msra.mxu0 0.0
    %412 = vmatprep.subr.mxu0 0.0
    %413 = vmatpush2.msra.mxu0 0.0
    %414 = vmatprep.subr.mxu0 0.0
    %415 = vmatpush2.msra.mxu0 0.0
    %416 = vmatprep.subr.mxu0 0.0
    %417 = vmatpush2.msra.mxu0 0.0
    %418 = vmatprep.subr.mxu0 0.0
    %419 = vmatpush2.msra.mxu0 0.0
    %420 = vmatprep.subr.mxu0 0.0
    %421 = vmatpush2.msra.mxu0 0.0
    %422 = vmatprep.subr.mxu0 0.0
    %423 = vmatpush2.msra.mxu0 0.0
    %424 = vmatprep.subr.mxu0 0.0
    %425 = vmatpush2.msra.mxu0 0.0
    %426 = vmatprep.subr.mxu0 0.0
    %427 = vmatpush2.msra.mxu0 0.0
    %428 = vmatprep.subr.mxu0 0.0
    %429 = vmatpush2.msra.mxu0 0.0
    %430 = vmatprep.subr.mxu0 0.0
    %431 = vmatpush2.msra.mxu0 0.0
    %432 = vmatprep.subr.mxu0 0.0
    %433 = vmatpush2.msra.mxu0 0.0
    %434 = vmatprep.subr.mxu0 0.0
    %435 = vmatpush2.msra.mxu0 0.0
    %436 = vmatprep.mubr.f32.mxu0 0.0
    %437 = vmatmul.mubr.f32.gmra.mxu0 %v191
    %v438 = vpop.f32.mrf.mxu0
    %v439 = vadd.f32 %v370, %v438
    %v440 = vpop.f32.mrf.mxu0
    %441 = vdwg.mxu0
    %v442 = vld [vmem:[#allocation9] sm:$0xff]
    %v443 = vld [vmem:[#allocation9 + $0x8] sm:$0xff]
    %v444 = vld [vmem:[#allocation9 + $0x10] sm:$0xff]
    %v445 = vld [vmem:[#allocation9 + $0x18] sm:$0xff]
    %v446 = vld [vmem:[#allocation9 + $0x20] sm:$0xff]
    %v447 = vld [vmem:[#allocation9 + $0x28] sm:$0xff]
    %v448 = vld [vmem:[#allocation9 + $0x30] sm:$0xff]
    %v449 = vld [vmem:[#allocation9 + $0x38] sm:$0xff]
    %v450 = vld [vmem:[#allocation9 + $0x40] sm:$0xff]
    %v451 = vld [vmem:[#allocation9 + $0x48] sm:$0xff]
    %v452 = vld [vmem:[#allocation9 + $0x50] sm:$0xff]
    %v453 = vld [vmem:[#allocation9 + $0x58] sm:$0xff]
    %v454 = vld [vmem:[#allocation9 + $0x60] sm:$0xff]
    %v455 = vld [vmem:[#allocation9 + $0x68] sm:$0xff]
    %v456 = vld [vmem:[#allocation9 + $0x70] sm:$0xff]
    %v457 = vld [vmem:[#allocation9 + $0x78] sm:$0xff]
    %v459 = vlaneseq
    %v460 = vshrl.u32 %v459, 7
    %v461 = vsub.s32 0, %v460
    %v462 = vrot.slane %v162, %v461
    %464 = vmatprep.subr.mxu0 0.0
    %465 = vmatpush1.msra.mxu0 %v457
    %466 = vmatprep.subr.mxu0 0.0
    %467 = vmatpush1.msra.mxu0 %v456
    %468 = vmatprep.subr.mxu0 0.0
    %469 = vmatpush1.msra.mxu0 %v455
    %470 = vmatprep.subr.mxu0 0.0
    %471 = vmatpush1.msra.mxu0 %v454
    %472 = vmatprep.subr.mxu0 0.0
    %473 = vmatpush1.msra.mxu0 %v453
    %474 = vmatprep.subr.mxu0 0.0
    %475 = vmatpush1.msra.mxu0 %v452
    %476 = vmatprep.subr.mxu0 0.0
    %477 = vmatpush1.msra.mxu0 %v451
    %478 = vmatprep.subr.mxu0 0.0
    %479 = vmatpush1.msra.mxu0 %v450
    %480 = vmatprep.subr.mxu0 0.0
    %481 = vmatpush1.msra.mxu0 %v449
    %482 = vmatprep.subr.mxu0 0.0
    %483 = vmatpush1.msra.mxu0 %v448
    %484 = vmatprep.subr.mxu0 0.0
    %485 = vmatpush1.msra.mxu0 %v447
    %486 = vmatprep.subr.mxu0 0.0
    %487 = vmatpush1.msra.mxu0 %v446
    %488 = vmatprep.subr.mxu0 0.0
    %489 = vmatpush1.msra.mxu0 %v445
    %490 = vmatprep.subr.mxu0 0.0
    %491 = vmatpush1.msra.mxu0 %v444
    %492 = vmatprep.subr.mxu0 0.0
    %493 = vmatpush1.msra.mxu0 %v443
    %494 = vmatprep.subr.mxu0 0.0
    %495 = vmatpush1.msra.mxu0 %v442
    %496 = vmatprep.subr.mxu0 0.0
    %497 = vmatpush2.msra.mxu0 0.0
    %498 = vmatprep.subr.mxu0 0.0
    %499 = vmatpush2.msra.mxu0 0.0
    %500 = vmatprep.subr.mxu0 0.0
    %501 = vmatpush2.msra.mxu0 0.0
    %502 = vmatprep.subr.mxu0 0.0
    %503 = vmatpush2.msra.mxu0 0.0
    %504 = vmatprep.subr.mxu0 0.0
    %505 = vmatpush2.msra.mxu0 0.0
    %506 = vmatprep.subr.mxu0 0.0
    %507 = vmatpush2.msra.mxu0 0.0
    %508 = vmatprep.subr.mxu0 0.0
    %509 = vmatpush2.msra.mxu0 0.0
    %510 = vmatprep.subr.mxu0 0.0
    %511 = vmatpush2.msra.mxu0 0.0
    %512 = vmatprep.subr.mxu0 0.0
    %513 = vmatpush2.msra.mxu0 0.0
    %514 = vmatprep.subr.mxu0 0.0
    %515 = vmatpush2.msra.mxu0 0.0
    %516 = vmatprep.subr.mxu0 0.0
    %517 = vmatpush2.msra.mxu0 0.0
    %518 = vmatprep.subr.mxu0 0.0
    %519 = vmatpush2.msra.mxu0 0.0
    %520 = vmatprep.subr.mxu0 0.0
    %521 = vmatpush2.msra.mxu0 0.0
    %522 = vmatprep.subr.mxu0 0.0
    %523 = vmatpush2.msra.mxu0 0.0
    %524 = vmatprep.subr.mxu0 0.0
    %525 = vmatpush2.msra.mxu0 0.0
    %526 = vmatprep.subr.mxu0 0.0
    %527 = vmatpush2.msra.mxu0 0.0
    %528 = vmatprep.mubr.f32.mxu0 0.0
    %529 = vmatmul.mubr.f32.gmra.mxu0 %v168
    %v530 = vpop.f32.mrf.mxu0
    %v531 = vadd.f32 %v462, %v530
    %v532 = vpop.f32.mrf.mxu0
    %533 = vdwg.mxu0
    %v534 = vmul.f32 %v347, %v531
    %v535 = vadd.f32 %v439, %v534
    %v536 = vtanh.pop %v535
    %v537 = vsub.f32 1.0, %v349
    %v538 = vmul.f32 %v537, %v536
    %v539 = vmul.f32 %v349, %v168
    %v540 = vadd.f32 %v538, %v539
    %v541 = vld [vmem:[#allocation11] sm:$0xff]
    %v542 = vld [vmem:[#allocation11 + $0x8] sm:$0xff]
    %v543 = vld [vmem:[#allocation11 + $0x10] sm:$0xff]
    %v544 = vld [vmem:[#allocation11 + $0x18] sm:$0xff]
    %v545 = vld [vmem:[#allocation11 + $0x20] sm:$0xff]
    %v546 = vld [vmem:[#allocation11 + $0x28] sm:$0xff]
    %v547 = vld [vmem:[#allocation11 + $0x30] sm:$0xff]
    %v548 = vld [vmem:[#allocation11 + $0x38] sm:$0xff]
    %v549 = vld [vmem:[#allocation11 + $0x40] sm:$0xff]
    %v550 = vld [vmem:[#allocation11 + $0x48] sm:$0xff]
    %v551 = vld [vmem:[#allocation11 + $0x50] sm:$0xff]
    %v552 = vld [vmem:[#allocation11 + $0x58] sm:$0xff]
    %v553 = vld [vmem:[#allocation11 + $0x60] sm:$0xff]
    %v554 = vld [vmem:[#allocation11 + $0x68] sm:$0xff]
    %v555 = vld [vmem:[#allocation11 + $0x70] sm:$0xff]
    %v556 = vld [vmem:[#allocation11 + $0x78] sm:$0xff]
    %v557 = vld [vmem:[#allocation11 + $0x80] sm:$0xff]
    %v558 = vld [vmem:[#allocation11 + $0x88] sm:$0xff]
    %v559 = vld [vmem:[#allocation11 + $0x90] sm:$0xff]
    %v560 = vld [vmem:[#allocation11 + $0x98] sm:$0xff]
    %v561 = vld [vmem:[#allocation11 + $0xa0] sm:$0xff]
    %v562 = vld [vmem:[#allocation11 + $0xa8] sm:$0xff]
    %v563 = vld [vmem:[#allocation11 + $0xb0] sm:$0xff]
    %v564 = vld [vmem:[#allocation11 + $0xb8] sm:$0xff]
    %v565 = vld [vmem:[#allocation11 + $0xc0] sm:$0xff]
    %v566 = vld [vmem:[#allocation11 + $0xc8] sm:$0xff]
    %v567 = vld [vmem:[#allocation11 + $0xd0] sm:$0xff]
    %v568 = vld [vmem:[#allocation11 + $0xd8] sm:$0xff]
    %v569 = vld [vmem:[#allocation11 + $0xe0] sm:$0xff]
    %v570 = vld [vmem:[#allocation11 + $0xe8] sm:$0xff]
    %v571 = vld [vmem:[#allocation11 + $0xf0] sm:$0xff]
    %v572 = vld [vmem:[#allocation11 + $0xf8] sm:$0xff]
    %v573 = vld [vmem:[#allocation11 + $0x100] sm:$0xff]
    %v574 = vld [vmem:[#allocation11 + $0x108] sm:$0xff]
    %v575 = vld [vmem:[#allocation11 + $0x110] sm:$0xff]
    %v576 = vld [vmem:[#allocation11 + $0x118] sm:$0xff]
    %v577 = vld [vmem:[#allocation11 + $0x120] sm:$0xff]
    %v578 = vld [vmem:[#allocation11 + $0x128] sm:$0xff]
    %v579 = vld [vmem:[#allocation11 + $0x130] sm:$0xff]
    %v580 = vld [vmem:[#allocation11 + $0x138] sm:$0xff]
    %v581 = vld [vmem:[#allocation11 + $0x140] sm:$0xff]
    %v582 = vld [vmem:[#allocation11 + $0x148] sm:$0xff]
    %v583 = vld [vmem:[#allocation11 + $0x150] sm:$0xff]
    %v584 = vld [vmem:[#allocation11 + $0x158] sm:$0xff]
    %v585 = vld [vmem:[#allocation11 + $0x160] sm:$0xff]
    %v586 = vld [vmem:[#allocation11 + $0x168] sm:$0xff]
    %v587 = vld [vmem:[#allocation11 + $0x170] sm:$0xff]
    %v588 = vld [vmem:[#allocation11 + $0x178] sm:$0xff]
    %v589 = vld [vmem:[#allocation11 + $0x180] sm:$0xff]
    %v590 = vld [vmem:[#allocation11 + $0x188] sm:$0xff]
    %v591 = vld [vmem:[#allocation11 + $0x190] sm:$0xff]
    %v592 = vld [vmem:[#allocation11 + $0x198] sm:$0xff]
    %v593 = vld [vmem:[#allocation11 + $0x1a0] sm:$0xff]
    %v594 = vld [vmem:[#allocation11 + $0x1a8] sm:$0xff]
    %v595 = vld [vmem:[#allocation11 + $0x1b0] sm:$0xff]
    %v596 = vld [vmem:[#allocation11 + $0x1b8] sm:$0xff]
    %v597 = vld [vmem:[#allocation11 + $0x1c0] sm:$0xff]
    %v598 = vld [vmem:[#allocation11 + $0x1c8] sm:$0xff]
    %v599 = vld [vmem:[#allocation11 + $0x1d0] sm:$0xff]
    %v600 = vld [vmem:[#allocation11 + $0x1d8] sm:$0xff]
    %v601 = vld [vmem:[#allocation11 + $0x1e0] sm:$0xff]
    %v602 = vld [vmem:[#allocation11 + $0x1e8] sm:$0xff]
    %v603 = vld [vmem:[#allocation11 + $0x1f0] sm:$0xff]
    %v604 = vld [vmem:[#allocation11 + $0x1f8] sm:$0xff]
    %v606 = vlaneseq
    %v607 = vshrl.u32 %v606, 7
    %v608 = vsub.s32 0, %v607
    %v609 = vrot.slane %v163, %v608
    %v610 = vlaneseq
    %v611 = vshrl.u32 %v610, 7
    %v612 = vsub.s32 1, %v611
    %v613 = vrot.slane %v163, %v612
    %616 = vmatprep.subr.mxu0 %v572
    %617 = vmatpush1.msra.mxu0 %v571
    %618 = vmatprep.subr.mxu0 %v570
    %619 = vmatpush1.msra.mxu0 %v569
    %620 = vmatprep.subr.mxu0 %v568
    %621 = vmatpush1.msra.mxu0 %v567
    %622 = vmatprep.subr.mxu0 %v566
    %623 = vmatpush1.msra.mxu0 %v565
    %624 = vmatprep.subr.mxu0 %v564
    %625 = vmatpush1.msra.mxu0 %v563
    %626 = vmatprep.subr.mxu0 %v562
    %627 = vmatpush1.msra.mxu0 %v561
    %628 = vmatprep.subr.mxu0 %v560
    %629 = vmatpush1.msra.mxu0 %v559
    %630 = vmatprep.subr.mxu0 %v558
    %631 = vmatpush1.msra.mxu0 %v557
    %632 = vmatprep.subr.mxu0 %v556
    %633 = vmatpush1.msra.mxu0 %v555
    %634 = vmatprep.subr.mxu0 %v554
    %635 = vmatpush1.msra.mxu0 %v553
    %636 = vmatprep.subr.mxu0 %v552
    %637 = vmatpush1.msra.mxu0 %v551
    %638 = vmatprep.subr.mxu0 %v550
    %639 = vmatpush1.msra.mxu0 %v549
    %640 = vmatprep.subr.mxu0 %v548
    %641 = vmatpush1.msra.mxu0 %v547
    %642 = vmatprep.subr.mxu0 %v546
    %643 = vmatpush1.msra.mxu0 %v545
    %644 = vmatprep.subr.mxu0 %v544
    %645 = vmatpush1.msra.mxu0 %v543
    %646 = vmatprep.subr.mxu0 %v542
    %647 = vmatpush1.msra.mxu0 %v541
    %648 = vmatprep.subr.mxu0 %v604
    %649 = vmatpush2.msra.mxu0 %v603
    %650 = vmatprep.subr.mxu0 %v602
    %651 = vmatpush2.msra.mxu0 %v601
    %652 = vmatprep.subr.mxu0 %v600
    %653 = vmatpush2.msra.mxu0 %v599
    %654 = vmatprep.subr.mxu0 %v598
    %655 = vmatpush2.msra.mxu0 %v597
    %656 = vmatprep.subr.mxu0 %v596
    %657 = vmatpush2.msra.mxu0 %v595
    %658 = vmatprep.subr.mxu0 %v594
    %659 = vmatpush2.msra.mxu0 %v593
    %660 = vmatprep.subr.mxu0 %v592
    %661 = vmatpush2.msra.mxu0 %v591
    %662 = vmatprep.subr.mxu0 %v590
    %663 = vmatpush2.msra.mxu0 %v589
    %664 = vmatprep.subr.mxu0 %v588
    %665 = vmatpush2.msra.mxu0 %v587
    %666 = vmatprep.subr.mxu0 %v586
    %667 = vmatpush2.msra.mxu0 %v585
    %668 = vmatprep.subr.mxu0 %v584
    %669 = vmatpush2.msra.mxu0 %v583
    %670 = vmatprep.subr.mxu0 %v582
    %671 = vmatpush2.msra.mxu0 %v581
    %672 = vmatprep.subr.mxu0 %v580
    %673 = vmatpush2.msra.mxu0 %v579
    %674 = vmatprep.subr.mxu0 %v578
    %675 = vmatpush2.msra.mxu0 %v577
    %676 = vmatprep.subr.mxu0 %v576
    %677 = vmatpush2.msra.mxu0 %v575
    %678 = vmatprep.subr.mxu0 %v574
    %679 = vmatpush2.msra.mxu0 %v573
    %680 = vmatprep.mubr.f32.mxu0 %v170
    %681 = vmatmul.mubr.f32.gmra.mxu0 %v540
    %v682 = vpop.f32.mrf.mxu0
    %v683 = vadd.f32 %v609, %v682
    %v684 = vpop.f32.mrf.mxu0
    %v685 = vadd.f32 %v613, %v684
    %686 = vdwg.mxu0
    %v687 = vxor.u32 %v683, 2147483648
    %v688 = vxor.u32 %v685, 2147483648
    %v689 = vmul.f32 %v687, 1.442695
    %v690 = vpow.pop %v689
    %v691 = vmul.f32 %v688, 1.442695
    %v692 = vpow.pop %v691
    %v693 = vadd.f32 %v690, 1.0
    %v694 = vadd.f32 %v692, 1.0
    %v695 = vrcp.pop %v693
    %v696 = vmul.f32 1.0, %v695
    %v697 = vrcp.pop %v694
    %v698 = vmul.f32 1.0, %v697
    %v699 = vld [vmem:[#allocation12] sm:$0xff]
    %v700 = vld [vmem:[#allocation12 + $0x8] sm:$0xff]
    %v701 = vld [vmem:[#allocation12 + $0x10] sm:$0xff]
    %v702 = vld [vmem:[#allocation12 + $0x18] sm:$0xff]
    %v703 = vld [vmem:[#allocation12 + $0x20] sm:$0xff]
    %v704 = vld [vmem:[#allocation12 + $0x28] sm:$0xff]
    %v705 = vld [vmem:[#allocation12 + $0x30] sm:$0xff]
    %v706 = vld [vmem:[#allocation12 + $0x38] sm:$0xff]
    %v707 = vld [vmem:[#allocation12 + $0x40] sm:$0xff]
    %v708 = vld [vmem:[#allocation12 + $0x48] sm:$0xff]
    %v709 = vld [vmem:[#allocation12 + $0x50] sm:$0xff]
    %v710 = vld [vmem:[#allocation12 + $0x58] sm:$0xff]
    %v711 = vld [vmem:[#allocation12 + $0x60] sm:$0xff]
    %v712 = vld [vmem:[#allocation12 + $0x68] sm:$0xff]
    %v713 = vld [vmem:[#allocation12 + $0x70] sm:$0xff]
    %v714 = vld [vmem:[#allocation12 + $0x78] sm:$0xff]
    %v716 = vlaneseq
    %v717 = vshrl.u32 %v716, 7
    %v718 = vsub.s32 0, %v717
    %v719 = vrot.slane %v164, %v718
    %721 = vmatprep.subr.mxu0 0.0
    %722 = vmatpush1.msra.mxu0 %v714
    %723 = vmatprep.subr.mxu0 0.0
    %724 = vmatpush1.msra.mxu0 %v713
    %725 = vmatprep.subr.mxu0 0.0
    %726 = vmatpush1.msra.mxu0 %v712
    %727 = vmatprep.subr.mxu0 0.0
    %728 = vmatpush1.msra.mxu0 %v711
    %729 = vmatprep.subr.mxu0 0.0
    %730 = vmatpush1.msra.mxu0 %v710
    %731 = vmatprep.subr.mxu0 0.0
    %732 = vmatpush1.msra.mxu0 %v709
    %733 = vmatprep.subr.mxu0 0.0
    %734 = vmatpush1.msra.mxu0 %v708
    %735 = vmatprep.subr.mxu0 0.0
    %736 = vmatpush1.msra.mxu0 %v707
    %737 = vmatprep.subr.mxu0 0.0
    %738 = vmatpush1.msra.mxu0 %v706
    %739 = vmatprep.subr.mxu0 0.0
    %740 = vmatpush1.msra.mxu0 %v705
    %741 = vmatprep.subr.mxu0 0.0
    %742 = vmatpush1.msra.mxu0 %v704
    %743 = vmatprep.subr.mxu0 0.0
    %744 = vmatpush1.msra.mxu0 %v703
    %745 = vmatprep.subr.mxu0 0.0
    %746 = vmatpush1.msra.mxu0 %v702
    %747 = vmatprep.subr.mxu0 0.0
    %748 = vmatpush1.msra.mxu0 %v701
    %749 = vmatprep.subr.mxu0 0.0
    %750 = vmatpush1.msra.mxu0 %v700
    %751 = vmatprep.subr.mxu0 0.0
    %752 = vmatpush1.msra.mxu0 %v699
    %753 = vmatprep.subr.mxu0 0.0
    %754 = vmatpush2.msra.mxu0 0.0
    %755 = vmatprep.subr.mxu0 0.0
    %756 = vmatpush2.msra.mxu0 0.0
    %757 = vmatprep.subr.mxu0 0.0
    %758 = vmatpush2.msra.mxu0 0.0
    %759 = vmatprep.subr.mxu0 0.0
    %760 = vmatpush2.msra.mxu0 0.0
    %761 = vmatprep.subr.mxu0 0.0
    %762 = vmatpush2.msra.mxu0 0.0
    %763 = vmatprep.subr.mxu0 0.0
    %764 = vmatpush2.msra.mxu0 0.0
    %765 = vmatprep.subr.mxu0 0.0
    %766 = vmatpush2.msra.mxu0 0.0
    %767 = vmatprep.subr.mxu0 0.0
    %768 = vmatpush2.msra.mxu0 0.0
    %769 = vmatprep.subr.mxu0 0.0
    %770 = vmatpush2.msra.mxu0 0.0
    %771 = vmatprep.subr.mxu0 0.0
    %772 = vmatpush2.msra.mxu0 0.0
    %773 = vmatprep.subr.mxu0 0.0
    %774 = vmatpush2.msra.mxu0 0.0
    %775 = vmatprep.subr.mxu0 0.0
    %776 = vmatpush2.msra.mxu0 0.0
    %777 = vmatprep.subr.mxu0 0.0
    %778 = vmatpush2.msra.mxu0 0.0
    %779 = vmatprep.subr.mxu0 0.0
    %780 = vmatpush2.msra.mxu0 0.0
    %781 = vmatprep.subr.mxu0 0.0
    %782 = vmatpush2.msra.mxu0 0.0
    %783 = vmatprep.subr.mxu0 0.0
    %784 = vmatpush2.msra.mxu0 0.0
    %785 = vmatprep.mubr.f32.mxu0 0.0
    %786 = vmatmul.mubr.f32.gmra.mxu0 %v540
    %v787 = vpop.f32.mrf.mxu0
    %v788 = vadd.f32 %v719, %v787
    %v789 = vpop.f32.mrf.mxu0
    %790 = vdwg.mxu0
    %v791 = vld [vmem:[#allocation14] sm:$0xff]
    %v792 = vld [vmem:[#allocation14 + $0x8] sm:$0xff]
    %v793 = vld [vmem:[#allocation14 + $0x10] sm:$0xff]
    %v794 = vld [vmem:[#allocation14 + $0x18] sm:$0xff]
    %v795 = vld [vmem:[#allocation14 + $0x20] sm:$0xff]
    %v796 = vld [vmem:[#allocation14 + $0x28] sm:$0xff]
    %v797 = vld [vmem:[#allocation14 + $0x30] sm:$0xff]
    %v798 = vld [vmem:[#allocation14 + $0x38] sm:$0xff]
    %v799 = vld [vmem:[#allocation14 + $0x40] sm:$0xff]
    %v800 = vld [vmem:[#allocation14 + $0x48] sm:$0xff]
    %v801 = vld [vmem:[#allocation14 + $0x50] sm:$0xff]
    %v802 = vld [vmem:[#allocation14 + $0x58] sm:$0xff]
    %v803 = vld [vmem:[#allocation14 + $0x60] sm:$0xff]
    %v804 = vld [vmem:[#allocation14 + $0x68] sm:$0xff]
    %v805 = vld [vmem:[#allocation14 + $0x70] sm:$0xff]
    %v806 = vld [vmem:[#allocation14 + $0x78] sm:$0xff]
    %v808 = vlaneseq
    %v809 = vshrl.u32 %v808, 7
    %v810 = vsub.s32 0, %v809
    %v811 = vrot.slane %v165, %v810
    %813 = vmatprep.subr.mxu0 0.0
    %814 = vmatpush1.msra.mxu0 %v806
    %815 = vmatprep.subr.mxu0 0.0
    %816 = vmatpush1.msra.mxu0 %v805
    %817 = vmatprep.subr.mxu0 0.0
    %818 = vmatpush1.msra.mxu0 %v804
    %819 = vmatprep.subr.mxu0 0.0
    %820 = vmatpush1.msra.mxu0 %v803
    %821 = vmatprep.subr.mxu0 0.0
    %822 = vmatpush1.msra.mxu0 %v802
    %823 = vmatprep.subr.mxu0 0.0
    %824 = vmatpush1.msra.mxu0 %v801
    %825 = vmatprep.subr.mxu0 0.0
    %826 = vmatpush1.msra.mxu0 %v800
    %827 = vmatprep.subr.mxu0 0.0
    %828 = vmatpush1.msra.mxu0 %v799
    %829 = vmatprep.subr.mxu0 0.0
    %830 = vmatpush1.msra.mxu0 %v798
    %831 = vmatprep.subr.mxu0 0.0
    %832 = vmatpush1.msra.mxu0 %v797
    %833 = vmatprep.subr.mxu0 0.0
    %834 = vmatpush1.msra.mxu0 %v796
    %835 = vmatprep.subr.mxu0 0.0
    %836 = vmatpush1.msra.mxu0 %v795
    %837 = vmatprep.subr.mxu0 0.0
    %838 = vmatpush1.msra.mxu0 %v794
    %839 = vmatprep.subr.mxu0 0.0
    %840 = vmatpush1.msra.mxu0 %v793
    %841 = vmatprep.subr.mxu0 0.0
    %842 = vmatpush1.msra.mxu0 %v792
    %843 = vmatprep.subr.mxu0 0.0
    %844 = vmatpush1.msra.mxu0 %v791
    %845 = vmatprep.subr.mxu0 0.0
    %846 = vmatpush2.msra.mxu0 0.0
    %847 = vmatprep.subr.mxu0 0.0
    %848 = vmatpush2.msra.mxu0 0.0
    %849 = vmatprep.subr.mxu0 0.0
    %850 = vmatpush2.msra.mxu0 0.0
    %851 = vmatprep.subr.mxu0 0.0
    %852 = vmatpush2.msra.mxu0 0.0
    %853 = vmatprep.subr.mxu0 0.0
    %854 = vmatpush2.msra.mxu0 0.0
    %855 = vmatprep.subr.mxu0 0.0
    %856 = vmatpush2.msra.mxu0 0.0
    %857 = vmatprep.subr.mxu0 0.0
    %858 = vmatpush2.msra.mxu0 0.0
    %859 = vmatprep.subr.mxu0 0.0
    %860 = vmatpush2.msra.mxu0 0.0
    %861 = vmatprep.subr.mxu0 0.0
    %862 = vmatpush2.msra.mxu0 0.0
    %863 = vmatprep.subr.mxu0 0.0
    %864 = vmatpush2.msra.mxu0 0.0
    %865 = vmatprep.subr.mxu0 0.0
    %866 = vmatpush2.msra.mxu0 0.0
    %867 = vmatprep.subr.mxu0 0.0
    %868 = vmatpush2.msra.mxu0 0.0
    %869 = vmatprep.subr.mxu0 0.0
    %870 = vmatpush2.msra.mxu0 0.0
    %871 = vmatprep.subr.mxu0 0.0
    %872 = vmatpush2.msra.mxu0 0.0
    %873 = vmatprep.subr.mxu0 0.0
    %874 = vmatpush2.msra.mxu0 0.0
    %875 = vmatprep.subr.mxu0 0.0
    %876 = vmatpush2.msra.mxu0 0.0
    %877 = vmatprep.mubr.f32.mxu0 0.0
    %878 = vmatmul.mubr.f32.gmra.mxu0 %v170
    %v879 = vpop.f32.mrf.mxu0
    %v880 = vadd.f32 %v811, %v879
    %v881 = vpop.f32.mrf.mxu0
    %882 = vdwg.mxu0
    %v883 = vmul.f32 %v696, %v880
    %v884 = vadd.f32 %v788, %v883
    %v885 = vtanh.pop %v884
    %v886 = vsub.f32 1.0, %v698
    %v887 = vmul.f32 %v886, %v885
    %v888 = vmul.f32 %v698, %v170
    %v889 = vadd.f32 %v887, %v888
    %v891 = vlaneseq
    %v892 = vshrl.u32 %v891, 7
    %v893 = vsub.s32 0, %v892
    %v894 = vrot.slane %v166, %v893
    %v896 = vmul.f32 %v889, %v894
    %897 = vadd.xlane.f32.xlu0 %v896
    %v898 = vpop.xlane.xlu0 %897
    %v899 = vstv %s167
    %v900 = vadd.f32 %v898, %v899
    %vm901 = vcmask 7168
    %902 = vst.msk [vmem:[%s18] sm:$0xff] %vm901, %v900
    %903 = vst [vmem:[#allocation15] sm:$0xff] %v540
    %s904 = scalar_lea.vmem [#allocation15], 8
    %905 = vst [vmem:[%s904] sm:$0xff] %v889
    // Predicated region
    $region102: #{tpu_custom_call.1} parent=1 // pred_check
      _
    $region103: #{tpu_custom_call.1} parent=1 // pred_check_branch
      %907 = sbr.rel (0) target = $region105
    $region104: #{tpu_custom_call.1} parent=1 // pred_region
      _
    $region105: #{tpu_custom_call.1} parent=1 // pred_fallthru
      _
    // Predicated region
    $region106: #{tpu_custom_call.1} parent=1 // pred_check
      _
    $region107: #{tpu_custom_call.1} parent=1 // pred_check_branch
      %909 = sbr.rel (0) target = $region109
    $region108: #{tpu_custom_call.1} parent=1 // pred_region
      %s911 = ssub.s32 256, 256
      %912 = vsyncadd [#allocation5], %s911
      %s913 = sshll.u32 [#allocation15], 4
      %s914 = int_to_ptr.vmem [resolvable:$true] %s913
      %919 = dma.vmem_to_hbm [thread:$0]  %s914, 256, %s19, [#allocation5], 128, 128, 8
    $region109: #{tpu_custom_call.1} parent=1 // pred_fallthru
      _
    // Predicated region
    $region110: #{tpu_custom_call.1} parent=1 // pred_check
      _
    $region111: #{tpu_custom_call.1} parent=1 // pred_check_branch
      %921 = sbr.rel (0) target = $region113
    $region112: #{tpu_custom_call.1} parent=1 // pred_region
      _
    $region113: #{tpu_custom_call.1} parent=1 // pred_fallthru
      _
    // Predicated region
    $region114: #{tpu_custom_call.1} parent=1 // pred_check
      _
    $region115: #{tpu_custom_call.1} parent=1 // pred_check_branch
      %923 = sbr.rel (0) target = $region117
    $region116: #{tpu_custom_call.1} parent=1 // pred_region
      %924 = dma.done [#allocation5], 256
    $region117: #{tpu_custom_call.1} parent=1 // pred_fallthru
      _
    %925 = vsyncpa [#allocation4], 1
    %926 = vsyncpa [#allocation7], 1
    %927 = vsyncpa [#allocation10], 1
    %928 = vsyncpa [#allocation13], 1
    %929 = vsyncpa [#allocation5], 1

</llo_original>
